<compile_context>
chip_gen: v7x
topology: tpu7x:2x2x1
jax: 0.10.0
libtpu: 0.0.40
codegen_flags: <defaults>
</compile_context>

<pallas_src>
from functools import partial

import jax
import jax.numpy as jnp
from jax.experimental import pallas as pl
from jax.experimental.pallas import tpu as pltpu


def _round_up(v, m):
    return ((v + m - 1) // m) * m


def _fused_bias_kernel(ab_ref, x_ref, o_ref, *, bounds, lo_col_tile):
    """out = a[col] * x + b[col] in a single streaming pass.

    ab_ref : SMEM float32[2*T] = [alpha_0, beta_0, alpha_1, beta_1, ...]
    bounds : static tuple of (low_i, high_i) Python ints (disjoint column ranges).
    Columns outside every range get (a, b) = (1, 0), i.e. identity.
    """
    tc = x_ref.shape[1]
    col0 = (pl.program_id(1) + lo_col_tile) * tc
    # (1, tc) column indices; rows handled by broadcasting so the temporaries stay
    # lane-row sized instead of tile sized.
    col = col0 + jax.lax.broadcasted_iota(jnp.int32, (1, tc), 1)
    a_row = jnp.ones((1, tc), jnp.float32)
    b_row = jnp.zeros((1, tc), jnp.float32)
    for i, (lo, hi) in enumerate(bounds):         # T is small -> static unroll
        m = (col >= lo) & (col < hi)
        a_row = jnp.where(m, ab_ref[2 * i], a_row)
        b_row = jnp.where(m, ab_ref[2 * i + 1], b_row)
    # f32 compute regardless of x dtype (matches PyTorch f32 nn.Parameters), cast
    # back at the store.
    xf = x_ref[...].astype(jnp.float32)
    o_ref[...] = (a_row * xf + b_row).astype(o_ref.dtype)


def _fused_impl(x, ab, bounds, tb, tc):
    B, C = x.shape
    Bp = _round_up(B, tb)
    Cp = _round_up(C, tc)
    # Pad at most once per forward; skipped entirely when already tile-aligned.
    x_p = x if (Bp == B and Cp == C) else jnp.pad(x, ((0, Bp - B), (0, Cp - C)))

    low_min = min(lo for lo, _ in bounds)
    high_max = max(hi for _, hi in bounds)
    lo_tile = low_min // tc                     # static (trace-time) ints
    hi_tile = -(-high_max // tc)
    n_col_tiles = hi_tile - lo_tile             # only tiles touching the window

    out = pl.pallas_call(
        partial(_fused_bias_kernel, bounds=bounds, lo_col_tile=lo_tile),
        out_shape=jax.ShapeDtypeStruct((Bp, Cp), x.dtype),
        grid=(Bp // tb, n_col_tiles),
        in_specs=[
            pl.BlockSpec(memory_space=pltpu.SMEM),                   # alpha/beta table
            pl.BlockSpec((tb, tc), lambda i, j: (i, j + lo_tile)),   # x tile
        ],
        out_specs=pl.BlockSpec((tb, tc), lambda i, j: (i, j + lo_tile)),
        # Output aliases the input buffer: column tiles outside the corrected window
        # are never visited and keep their original values (no wasted read+write).
        input_output_aliases={1: 0},
        compiler_params=pltpu.CompilerParams(
            dimension_semantics=("parallel", "parallel"),
            vmem_limit_bytes=40 * 1024 * 1024),
    )(ab, x_p)

    if Bp != B or Cp != C:
        out = out[:B, :C]
    return out


_fused = jax.jit(_fused_impl, static_argnums=(2, 3, 4))
_fused_donated = jax.jit(_fused_impl, static_argnums=(2, 3, 4), donate_argnums=(0,))


def _pick_tiles(B, C, low_min, high_max, tb, tc):
    # Lane-dense column tile (multiple of 128, <= 2048); row tile a multiple of 16
    # (<= 512) -> worst-case 4 MiB f32 tile.  vmem_limit_bytes=40 MiB covers the
    # double-buffered in/out tiles + f32 temporaries on every generation.
    if tc is None:
        tc = min(_round_up(C, 128), 2048)
    n_col_tiles = (-(-high_max // tc)) - (low_min // tc)
    if tb is None:
        tb = min(_round_up(B, 16), 512)
        n_row_tiles = _round_up(B, tb) // tb
        # v7x megacore: if the corrected window is a single column tile, split rows
        # so both TensorCores get work (no-op on v5e/v6e which have 1 TC).
        if n_col_tiles * n_row_tiles < 2 and B >= 32:
            tb = _round_up((B + 1) // 2, 16)
    return tb, tc


def bias_correction_forward(logits, task_sizes, bias_params, *, tb=None, tc=None,
                            donate=False):
    """Fused equivalent of the IncrementalNetWithBias.forward bias-correction loop.

    One HBM read + one HBM write regardless of the number of tasks.  Set
    donate=True when the caller will not reuse `logits` (true in-place update).
    """
    assert len(bias_params) == len(task_sizes)
    B, C = logits.shape
    kept = []
    off = 0
    for (a, b), s in zip(bias_params, task_sizes):
        lo, hi = off, off + int(s)
        off += int(s)
        lo_c = max(0, min(lo, C))
        hi_c = max(lo_c, min(hi, C))
        if hi_c > lo_c:
            kept.append(((lo_c, hi_c), (a, b)))
    if not kept:
        return logits
    bounds = tuple(r for r, _ in kept)
    ab = jnp.asarray([v for _, p in kept for v in p], dtype=jnp.float32)
    low_min = min(lo for lo, _ in bounds)
    high_max = max(hi for _, hi in bounds)
    tb_r, tc_r = _pick_tiles(B, C, low_min, high_max, tb, tc)
    fn = _fused_donated if donate else _fused
    return fn(logits, ab, bounds, tb_r, tc_r)


def bias_layer(x, alpha, beta, low_range, high_range, *, tb=None, tc=None,
               donate=False):
    """Pallas equivalent of a single BiasLayer.forward(x, low_range, high_range)."""
    B, C = x.shape
    lo = max(0, min(int(low_range), C))
    hi = max(lo, min(int(high_range), C))
    if hi <= lo:
        return x
    bounds = ((lo, hi),)
    ab = jnp.asarray([alpha, beta], dtype=jnp.float32)
    tb_r, tc_r = _pick_tiles(B, C, lo, hi, tb, tc)
    fn = _fused_donated if donate else _fused
    return fn(x, ab, bounds, tb_r, tc_r)


if __name__ == "__main__":
    key = jax.random.PRNGKey(0)

    # (batch, num_classes) logits, as produced by the fc head.
    B, C = 4, 32
    x = jax.random.normal(key, (B, C), dtype=jnp.float32)

    # 1) Single BiasLayer, default init (alpha=1, beta=0): identity on the range.
    out = jax.block_until_ready(bias_layer(x, 1.0, 0.0, 8, 24))
    ref = x.at[:, 8:24].set(1.0 * x[:, 8:24] + 0.0)
    assert out.shape == x.shape and out.dtype == x.dtype
    assert jnp.allclose(out, ref, atol=1e-6, rtol=1e-6)

    # 2) Non-trivial alpha/beta.
    out2 = jax.block_until_ready(bias_layer(x, 0.5, -0.25, 8, 24))
    ref2 = x.at[:, 8:24].set(0.5 * x[:, 8:24] - 0.25)
    assert jnp.allclose(out2, ref2, atol=1e-6, rtol=1e-6)

    # 3) bf16 input: affine computed in f32 (f32 params), cast at the store.
    x_bf = x.astype(jnp.bfloat16)
    out_bf = jax.block_until_ready(bias_layer(x_bf, 0.5, -0.25, 8, 24))
    ref_bf = x_bf.at[:, 8:24].set(
        (0.5 * x_bf[:, 8:24].astype(jnp.float32) - 0.25).astype(jnp.bfloat16))
    assert out_bf.dtype == jnp.bfloat16
    assert jnp.allclose(out_bf.astype(jnp.float32), ref_bf.astype(jnp.float32),
                        atol=1e-2, rtol=1e-2)

    # 4) Restricted column-window grid: only the tiles intersecting [200, 300) are
    #    visited; untouched columns are preserved through the output alias.
    x_big = jax.random.normal(jax.random.PRNGKey(1), (16, 384), dtype=jnp.float32)
    ref_big = x_big.at[:, 200:300].set(1.25 * x_big[:, 200:300] + 0.5)
    out_big = jax.block_until_ready(
        bias_layer(x_big, 1.25, 0.5, 200, 300, tb=16, tc=128))   # grid = (1, 2)
    assert jnp.allclose(out_big, ref_big, atol=1e-6, rtol=1e-6)

    # 5) Fused chain (IncrementalNetWithBias.forward loop) in ONE pallas_call,
    #    checked against sequential per-layer application.
    task_sizes = [16, 16]
    bias_params = [(1.0, 0.0), (0.8, 0.1)]
    logits = jax.block_until_ready(bias_correction_forward(x, task_sizes, bias_params))
    ref_chain = x
    off = 0
    for (a, b), s in zip(bias_params, task_sizes):
        ref_chain = ref_chain.at[:, off:off + s].set(a * ref_chain[:, off:off + s] + b)
        off += s
    assert jnp.allclose(logits, ref_chain, atol=1e-6, rtol=1e-6)

    # 6) Larger batch + 3-task chain with a donated logits buffer (real in-place
    #    update, no defensive copy); rows split so a v7x megacore gets 2 grid cells.
    x3 = jax.random.normal(jax.random.PRNGKey(2), (64, 384), dtype=jnp.float32)
    sizes3 = [128, 128, 128]
    params3 = [(1.0, 0.0), (0.9, 0.05), (0.7, -0.2)]
    ref3 = x3
    off = 0
    for (a, b), s in zip(params3, sizes3):
        ref3 = ref3.at[:, off:off + s].set(a * ref3[:, off:off + s] + b)
        off += s
    out3 = jax.block_until_ready(
        bias_correction_forward(jnp.copy(x3), sizes3, params3, donate=True))
    assert jnp.allclose(out3, ref3, atol=1e-6, rtol=1e-6)

    print("KERNEL_OK")
</pallas_src>

<mosaic_0001>
module attributes {stable_mosaic.version = 11 : i64} {
  func.func @_fused_bias_kernel(%arg0: i32, %arg1: i32, %arg2: memref<2xf32, #tpu.memory_space<smem>>, %arg3: memref<16x128xf32, #tpu.memory_space<vmem>>, %arg4: memref<16x128xf32, #tpu.memory_space<vmem>>) attributes {dimension_semantics = [#tpu.dimension_semantics<parallel>, #tpu.dimension_semantics<parallel>], iteration_bounds = array<i64: 1, 1>, scalar_prefetch = 0 : i64, scratch_operands = 0 : i64, tpu.core_type = #tpu.core_type<tc>, window_params = [{transform_indices = @transform_0, window_bounds = array<i64: 2>}, {transform_indices = @transform_1, window_bounds = array<i64: 16, 128>}, {transform_indices = @transform_2, window_bounds = array<i64: 16, 128>}]} {
    %c0_i32 = arith.constant 0 : i32
    %0 = arith.addi %arg1, %c0_i32 : i32
    %c128_i32 = arith.constant 128 : i32
    %1 = arith.muli %0, %c128_i32 : i32
    %2 = tpu.iota {dimensions = array<i32: 1>} : vector<1x128xi32>
    %3 = vector.broadcast %1 : i32 to vector<1x128xi32>
    %4 = arith.addi %3, %2 : vector<1x128xi32>
    %cst = arith.constant 1.000000e+00 : f32
    %5 = vector.broadcast %cst : f32 to vector<1x128xf32>
    %cst_0 = arith.constant 0.000000e+00 : f32
    %6 = vector.broadcast %cst_0 : f32 to vector<1x128xf32>
    %c8_i32 = arith.constant 8 : i32
    %7 = vector.broadcast %c8_i32 : i32 to vector<1x128xi32>
    %8 = arith.cmpi sge, %4, %7 : vector<1x128xi32>
    %c24_i32 = arith.constant 24 : i32
    %9 = vector.broadcast %c24_i32 : i32 to vector<1x128xi32>
    %10 = arith.cmpi slt, %4, %9 : vector<1x128xi32>
    %11 = arith.andi %8, %10 : vector<1x128xi1>
    %c0 = arith.constant 0 : index
    %12 = memref.load %arg2[%c0] : memref<2xf32, #tpu.memory_space<smem>>
    %13 = vector.broadcast %12 : f32 to vector<1x128xf32>
    %14 = arith.select %11, %13, %5 : vector<1x128xi1>, vector<1x128xf32>
    %c1 = arith.constant 1 : index
    %15 = memref.load %arg2[%c1] : memref<2xf32, #tpu.memory_space<smem>>
    %16 = vector.broadcast %15 : f32 to vector<1x128xf32>
    %17 = arith.select %11, %16, %6 : vector<1x128xi1>, vector<1x128xf32>
    %c0_1 = arith.constant 0 : index
    %c0_2 = arith.constant 0 : index
    %18 = vector.load %arg3[%c0_1, %c0_2] : memref<16x128xf32, #tpu.memory_space<vmem>>, vector<16x128xf32>
    %19 = vector.broadcast %14 : vector<1x128xf32> to vector<16x128xf32>
    %20 = arith.mulf %19, %18 : vector<16x128xf32>
    %21 = vector.broadcast %17 : vector<1x128xf32> to vector<16x128xf32>
    %22 = arith.addf %20, %21 : vector<16x128xf32>
    %c0_3 = arith.constant 0 : index
    %c0_4 = arith.constant 0 : index
    %23 = vector.load %arg4[%c0_3, %c0_4] : memref<16x128xf32, #tpu.memory_space<vmem>>, vector<16x128xf32>
    tpu.vector_store %arg4[%c0_3, %c0_4], %22 {strides = array<i32>} : memref<16x128xf32, #tpu.memory_space<vmem>>, vector<16x128xf32>,
    return
  }
  func.func @transform_0(%arg0: i32, %arg1: i32) -> i32 {
    %c0_i32 = arith.constant 0 : i32
    %c0_i32_0 = arith.constant 0 : i32
    return %c0_i32 : i32
  }
  func.func @transform_1(%arg0: i32, %arg1: i32) -> (i32, i32) {
    %c0_i32 = arith.constant 0 : i32
    %0 = arith.addi %arg1, %c0_i32 : i32
    %c0_i32_0 = arith.constant 0 : i32
    return %arg0, %0 : i32, i32
  }
  func.func @transform_2(%arg0: i32, %arg1: i32) -> (i32, i32) {
    %c0_i32 = arith.constant 0 : i32
    %0 = arith.addi %arg1, %c0_i32 : i32
    %c0_i32_0 = arith.constant 0 : i32
    return %arg0, %0 : i32, i32
  }
}

</mosaic_0001>

<llo_original>
// kernel: _fused_impl.1
$region0: #{_fused_impl.1}
  #allocation0 [shape = 'u32[]', space=smem, size = 0x4, offset = 0x4, fixed_abs, tag = 'smem constant byte address 0x4 - core index']
  #allocation1 [shape = 'u32[144,128]{1,0:T(1,128)}', space=vmem, size = 0x12000, scoped, tag = 'internal scratch']
  %s0 = inlined_call_operand.vmem [shape: f32[2], index: 0, kind: input, shape index: {}]
  %s1 = inlined_call_operand.vmem [shape: f32[16,128], index: 1, kind: input, shape index: {}, may-alias: {1,2}]
  %s2 = inlined_call_operand.vmem [shape: f32[16,128], index: 2, kind: output, shape index: {}, may-alias: {1,2}]
  %s3 = sld [smem:[#allocation0]]
  $region22: #{_fused_impl.1} parent=0
    _
  %s5 = ssub.s32 1, %s3
  %s6 = scalar_select 0, %s5, %s3
  $region1: #{_fused_impl.1} parent=0
    #allocation2 [shape = 'u8[512]{0}', space=smem, size = 0x200, scoped, tag = 'input window, operand 0, single buffered']
    #allocation3 [shape = 's32[1]{0}', space=sflag, size = 0x4, scoped, tag = 'scoped memory for _fused_impl.1']
    %7 = vsyncpa [#allocation3], 0
    // Predicated region
    $region2: #{_fused_impl.1} parent=1 // pred_check
      _
    $region3: #{_fused_impl.1} parent=1 // pred_check_branch
      %9 = sbr.rel (0) target = $region5
    $region4: #{_fused_impl.1} parent=1 // pred_region
      %s11 = ssub.s32 16, 16
      %12 = vsyncadd [#allocation3], %s11
      %s14 = sshll.u32 %s0, 4
      %s15 = int_to_ptr.vmem [resolvable:$true] %s14
      %17 = dma.vmem_to_smem %s15, 16, [#allocation2], [#allocation3]
    $region5: #{_fused_impl.1} parent=1 // pred_fallthru
      _
    // Predicated region
    $region6: #{_fused_impl.1} parent=1 // pred_check
      _
    $region7: #{_fused_impl.1} parent=1 // pred_check_branch
      %19 = sbr.rel (0) target = $region9
    $region8: #{_fused_impl.1} parent=1 // pred_region
      _
    $region9: #{_fused_impl.1} parent=1 // pred_fallthru
      _
    // Predicated region
    $region10: #{_fused_impl.1} parent=1 // pred_check
      _
    $region11: #{_fused_impl.1} parent=1 // pred_check_branch
      %21 = sbr.rel (0) target = $region13
    $region12: #{_fused_impl.1} parent=1 // pred_region
      %22 = dma.done [#allocation3], 16
    $region13: #{_fused_impl.1} parent=1 // pred_fallthru
      _
    %23 = sfence
    %s24 = smul.u32 0, 128
    %v25 = vlaneseq
    %v26 = vand.u32 %v25, 127
    %v27 = vstv %s24
    %v28 = vadd.s32 %v27, %v26
    %vm29 = vcmp.ge.s32.totalorder %v28, 8
    %vm30 = vcmp.lt.s32.totalorder %v28, 24
    %vm31 = vmand %vm29, %vm30
    %s32 = sld [smem:[#allocation2]]
    %v33 = vstv %s32
    %v34 = vsel %vm31, %v33, 1.0
    %s35 = sld [smem:[#allocation2 + $0x1]]
    %v36 = vstv %s35
    %v37 = vsel %vm31, %v36, 0.0
    %v38 = vld [vmem:[%s1] sm:$0xff]
    %v39 = vld [vmem:[%s1 + $0x8] sm:$0xff]
    %v40 = vmul.f32 %v34, %v38
    %v41 = vmul.f32 %v34, %v39
    %v42 = vadd.f32 %v40, %v37
    %v43 = vadd.f32 %v41, %v37
    %44 = vst [vmem:[%s2] sm:$0xff] %v42
    %45 = vst [vmem:[%s2 + $0x8] sm:$0xff] %v43
    // Predicated region
    $region14: #{_fused_impl.1} parent=1 // pred_check
      _
    $region15: #{_fused_impl.1} parent=1 // pred_check_branch
      %47 = sbr.rel (0) target = $region17
    $region16: #{_fused_impl.1} parent=1 // pred_region
      _
    $region17: #{_fused_impl.1} parent=1 // pred_fallthru
      _
    // Predicated region
    $region18: #{_fused_impl.1} parent=1 // pred_check
      _
    $region19: #{_fused_impl.1} parent=1 // pred_check_branch
      %49 = sbr.rel (0) target = $region21
    $region20: #{_fused_impl.1} parent=1 // pred_region
      _
    $region21: #{_fused_impl.1} parent=1 // pred_fallthru
      _
    %50 = vsyncpa [#allocation3], 1

</llo_original>
